<compile_context>
chip_gen: v6e
topology: v6e:2x2x1
jax: 0.10.0
libtpu: 0.0.40
codegen_flags: <defaults>
</compile_context>

<pallas_src>
import functools

import jax
import jax.numpy as jnp
import numpy as np
from jax import lax
from jax.experimental import pallas as pl
from jax.experimental.pallas import tpu as pltpu


def _lstm_net_kernel(x_ref, wih_ref, whh_ref, b_ref, wout_ref, bout_ref,
                     out_ref, *, T, B, H):
    """Entire forward pass (hoisted projection + recurrence + linear).

    x_ref:   (T*B, F)    bf16, time-major flattened input
    wih_ref: (F, 4H)     bf16, input->gates weights (transposed)
    whh_ref: (H, 4H)     bf16, hidden->gates weights (transposed)
    b_ref:   (1, 4H)     f32,  b_ih + b_hh
    wout_ref:(H, Cp)     bf16, output linear weights (transposed, lane-padded)
    bout_ref:(1, Cp)     f32,  output linear bias (lane-padded)
    out_ref: (B, Cp)     f32,  logits for last timestep (lane-padded)
    """
    # One batched MXU matmul for ALL timesteps' input projection (+ bias once).
    pre = (
        jnp.dot(x_ref[...], wih_ref[...], preferred_element_type=jnp.float32)
        + b_ref[...]
    )                                                   # (T*B, 4H) f32

    whh = whh_ref[...]                                  # hoist weight load (bf16)

    # hidden=None in the PyTorch module -> zero initial (h, c).
    # Carried as register values in f32, not VMEM scratch.
    h = jnp.zeros((B, H), jnp.float32)
    c = jnp.zeros((B, H), jnp.float32)

    # Fully unrolled static recurrence: only ONE small bf16 MXU matmul per
    # step on the serial critical path; gate math stays in f32.
    for t in range(T):
        gates = (
            pre[t * B:(t + 1) * B, :]                   # (B, 4H), static slice
            + jnp.dot(h.astype(jnp.bfloat16), whh,
                      preferred_element_type=jnp.float32)
        )
        sg = jax.nn.sigmoid(gates)                      # full-width: i, f, o
        i_g = sg[:, 0 * H:1 * H]
        f_g = sg[:, 1 * H:2 * H]
        o_g = sg[:, 3 * H:4 * H]
        g_g = jnp.tanh(gates[:, 2 * H:3 * H])

        c = f_g * c + i_g * g_g
        h = o_g * jnp.tanh(c)

    # result = Linear(h_T); lane-dense (padded to 128 columns) store.
    out_ref[...] = (
        jnp.dot(h.astype(jnp.bfloat16), wout_ref[...],
                preferred_element_type=jnp.float32)
        + bout_ref[...]
    )


def lstm_net_forward(x, w_ih, w_hh, b_ih, b_hh, w_out, b_out):
    """x: (B, T, F) float32 -> (B, C) float32 (PyTorch LstmNet.forward)."""
    B, T, F = x.shape
    H4 = w_ih.shape[0]
    H = H4 // 4
    C = w_out.shape[0]
    C_pad = ((C + 127) // 128) * 128                     # lane-dense output

    # Layout plumbing on tiny arrays (done once by XLA outside the kernel):
    # time-major + flattened so the kernel's input projection is one matmul
    # and each per-step slab is a contiguous static slice.  Matmul operands
    # cast to bf16 (f32 accumulation inside the kernel); biases stay f32.
    x_flat = jnp.transpose(x, (1, 0, 2)).reshape(T * B, F)
    x_flat = x_flat.astype(jnp.bfloat16)                       # (T*B, F)
    wih_t = jnp.transpose(w_ih).astype(jnp.bfloat16)           # (F, 4H)
    whh_t = jnp.transpose(w_hh).astype(jnp.bfloat16)           # (H, 4H)
    bias = (b_ih + b_hh).reshape(1, 4 * H).astype(jnp.float32)  # (1, 4H)
    wout_t = jnp.zeros((H, C_pad), jnp.bfloat16)
    wout_t = wout_t.at[:, :C].set(jnp.transpose(w_out).astype(jnp.bfloat16))
    bout = jnp.zeros((1, C_pad), jnp.float32)
    bout = bout.at[:, :C].set(b_out.reshape(1, C).astype(jnp.float32))

    kernel = functools.partial(_lstm_net_kernel, T=T, B=B, H=H)

    # No grid: single invocation, every operand resident whole-array in VMEM
    # (nothing to pipeline, inputs read exactly once).
    vmem_spec = pl.BlockSpec(memory_space=pltpu.MemorySpace.VMEM)

    out_full = pl.pallas_call(
        kernel,
        out_shape=jax.ShapeDtypeStruct((B, C_pad), jnp.float32),
        in_specs=[vmem_spec] * 6,
        out_specs=vmem_spec,
    )(x_flat, wih_t, whh_t, bias, wout_t, bout)

    return out_full[:, :C]


def _reference_forward(x, w_ih, w_hh, b_ih, b_hh, w_out, b_out):
    """Pure-JAX f32 reference mirroring torch.nn.LSTM + Linear."""
    B, T, F = x.shape
    H = w_hh.shape[1]

    def step(carry, x_t):
        h, c = carry
        gates = x_t @ w_ih.T + b_ih + h @ w_hh.T + b_hh
        i = jax.nn.sigmoid(gates[:, 0 * H:1 * H])
        f = jax.nn.sigmoid(gates[:, 1 * H:2 * H])
        g = jnp.tanh(gates[:, 2 * H:3 * H])
        o = jax.nn.sigmoid(gates[:, 3 * H:4 * H])
        c = f * c + i * g
        h = o * jnp.tanh(c)
        return (h, c), h

    init = (jnp.zeros((B, H), jnp.float32), jnp.zeros((B, H), jnp.float32))
    (h_last, _), _ = lax.scan(step, init, jnp.transpose(x, (1, 0, 2)))
    return h_last @ w_out.T + b_out


if __name__ == "__main__":
    # Small shapes consistent with the module's forward:
    #   x: (batch, seq, features) = (4, 8, 16), hidden=32, classes=10
    B, T, F, H, C = 4, 8, 16, 32, 10

    key = jax.random.PRNGKey(0)
    ks = jax.random.split(key, 7)
    scale = 1.0 / np.sqrt(H)
    x = jax.random.normal(ks[0], (B, T, F), dtype=jnp.float32)
    w_ih = jax.random.uniform(ks[1], (4 * H, F), jnp.float32, -scale, scale)
    w_hh = jax.random.uniform(ks[2], (4 * H, H), jnp.float32, -scale, scale)
    b_ih = jax.random.uniform(ks[3], (4 * H,), jnp.float32, -scale, scale)
    b_hh = jax.random.uniform(ks[4], (4 * H,), jnp.float32, -scale, scale)
    w_out = jax.random.uniform(ks[5], (C, H), jnp.float32, -scale, scale)
    b_out = jax.random.uniform(ks[6], (C,), jnp.float32, -scale, scale)

    out = lstm_net_forward(x, w_ih, w_hh, b_ih, b_hh, w_out, b_out)
    out = jax.block_until_ready(out)

    ref = _reference_forward(x, w_ih, w_hh, b_ih, b_hh, w_out, b_out)
    # Tolerance relaxed for bf16 MXU operands (f32 accumulation).
    np.testing.assert_allclose(np.asarray(out), np.asarray(ref),
                               rtol=5e-2, atol=5e-2)
    print("KERNEL_OK")
</pallas_src>

<mosaic_0001>
module attributes {stable_mosaic.version = 11 : i64} {
  func.func @_lstm_net_kernel(%arg0: memref<32x16xbf16, #tpu.memory_space<vmem>>, %arg1: memref<16x128xbf16, #tpu.memory_space<vmem>>, %arg2: memref<32x128xbf16, #tpu.memory_space<vmem>>, %arg3: memref<1x128xf32, #tpu.memory_space<vmem>>, %arg4: memref<32x128xbf16, #tpu.memory_space<vmem>>, %arg5: memref<1x128xf32, #tpu.memory_space<vmem>>, %arg6: memref<4x128xf32, #tpu.memory_space<vmem>>) attributes {dimension_semantics = [], scalar_prefetch = 0 : i64, scratch_operands = 0 : i64, tpu.core_type = #tpu.core_type<tc>} {
    %c0 = arith.constant 0 : index
    %c0_0 = arith.constant 0 : index
    %0 = vector.load %arg0[%c0, %c0_0] : memref<32x16xbf16, #tpu.memory_space<vmem>>, vector<32x16xbf16>
    %c0_1 = arith.constant 0 : index
    %c0_2 = arith.constant 0 : index
    %1 = vector.load %arg1[%c0_1, %c0_2] : memref<16x128xbf16, #tpu.memory_space<vmem>>, vector<16x128xbf16>
    %cst = arith.constant dense<0.000000e+00> : vector<32x128xf32>
    %2 = tpu.matmul %0, %1, %cst {dimension_numbers = #tpu.dot_dimension_numbers<[1], [0], [0], [1], [0, 0, 1, 1], [], []>} : vector<32x16xbf16>, vector<16x128xbf16>, vector<32x128xf32> -> vector<32x128xf32>
    %c0_3 = arith.constant 0 : index
    %c0_4 = arith.constant 0 : index
    %3 = vector.load %arg3[%c0_3, %c0_4] : memref<1x128xf32, #tpu.memory_space<vmem>>, vector<1x128xf32>
    %4 = vector.broadcast %3 : vector<1x128xf32> to vector<32x128xf32>
    %5 = arith.addf %2, %4 : vector<32x128xf32>
    %c0_5 = arith.constant 0 : index
    %c0_6 = arith.constant 0 : index
    %6 = vector.load %arg2[%c0_5, %c0_6] : memref<32x128xbf16, #tpu.memory_space<vmem>>, vector<32x128xbf16>
    %cst_7 = arith.constant 0.000000e+00 : f32
    %7 = vector.broadcast %cst_7 : f32 to vector<4x32xf32>
    %cst_8 = arith.constant 0.000000e+00 : f32
    %8 = vector.broadcast %cst_8 : f32 to vector<4x32xf32>
    %9 = vector.extract_strided_slice %5 {offsets = [0, 0], sizes = [4, 128], strides = [1, 1]} : vector<32x128xf32> to vector<4x128xf32>
    %10 = arith.truncf %7 : vector<4x32xf32> to vector<4x32xbf16>
    %cst_9 = arith.constant dense<0.000000e+00> : vector<4x128xf32>
    %11 = tpu.matmul %10, %6, %cst_9 {dimension_numbers = #tpu.dot_dimension_numbers<[1], [0], [0], [1], [0, 0, 1, 1], [], []>} : vector<4x32xbf16>, vector<32x128xbf16>, vector<4x128xf32> -> vector<4x128xf32>
    %12 = arith.addf %9, %11 : vector<4x128xf32>
    %13 = arith.negf %12 : vector<4x128xf32>
    %14 = math.exp %13 : vector<4x128xf32>
    %cst_10 = arith.constant 1.000000e+00 : f32
    %15 = vector.broadcast %cst_10 : f32 to vector<4x128xf32>
    %16 = arith.addf %15, %14 : vector<4x128xf32>
    %17 = arith.divf %15, %16 : vector<4x128xf32>
    %18 = vector.extract_strided_slice %17 {offsets = [0, 0], sizes = [4, 32], strides = [1, 1]} : vector<4x128xf32> to vector<4x32xf32>
    %19 = vector.extract_strided_slice %17 {offsets = [0, 32], sizes = [4, 32], strides = [1, 1]} : vector<4x128xf32> to vector<4x32xf32>
    %20 = vector.extract_strided_slice %17 {offsets = [0, 96], sizes = [4, 32], strides = [1, 1]} : vector<4x128xf32> to vector<4x32xf32>
    %21 = vector.extract_strided_slice %12 {offsets = [0, 64], sizes = [4, 32], strides = [1, 1]} : vector<4x128xf32> to vector<4x32xf32>
    %22 = math.tanh %21 : vector<4x32xf32>
    %23 = arith.mulf %19, %8 : vector<4x32xf32>
    %24 = arith.mulf %18, %22 : vector<4x32xf32>
    %25 = arith.addf %23, %24 : vector<4x32xf32>
    %26 = math.tanh %25 : vector<4x32xf32>
    %27 = arith.mulf %20, %26 : vector<4x32xf32>
    %28 = vector.extract_strided_slice %5 {offsets = [4, 0], sizes = [4, 128], strides = [1, 1]} : vector<32x128xf32> to vector<4x128xf32>
    %29 = arith.truncf %27 : vector<4x32xf32> to vector<4x32xbf16>
    %cst_11 = arith.constant dense<0.000000e+00> : vector<4x128xf32>
    %30 = tpu.matmul %29, %6, %cst_11 {dimension_numbers = #tpu.dot_dimension_numbers<[1], [0], [0], [1], [0, 0, 1, 1], [], []>} : vector<4x32xbf16>, vector<32x128xbf16>, vector<4x128xf32> -> vector<4x128xf32>
    %31 = arith.addf %28, %30 : vector<4x128xf32>
    %32 = arith.negf %31 : vector<4x128xf32>
    %33 = math.exp %32 : vector<4x128xf32>
    %cst_12 = arith.constant 1.000000e+00 : f32
    %34 = vector.broadcast %cst_12 : f32 to vector<4x128xf32>
    %35 = arith.addf %34, %33 : vector<4x128xf32>
    %36 = arith.divf %34, %35 : vector<4x128xf32>
    %37 = vector.extract_strided_slice %36 {offsets = [0, 0], sizes = [4, 32], strides = [1, 1]} : vector<4x128xf32> to vector<4x32xf32>
    %38 = vector.extract_strided_slice %36 {offsets = [0, 32], sizes = [4, 32], strides = [1, 1]} : vector<4x128xf32> to vector<4x32xf32>
    %39 = vector.extract_strided_slice %36 {offsets = [0, 96], sizes = [4, 32], strides = [1, 1]} : vector<4x128xf32> to vector<4x32xf32>
    %40 = vector.extract_strided_slice %31 {offsets = [0, 64], sizes = [4, 32], strides = [1, 1]} : vector<4x128xf32> to vector<4x32xf32>
    %41 = math.tanh %40 : vector<4x32xf32>
    %42 = arith.mulf %38, %25 : vector<4x32xf32>
    %43 = arith.mulf %37, %41 : vector<4x32xf32>
    %44 = arith.addf %42, %43 : vector<4x32xf32>
    %45 = math.tanh %44 : vector<4x32xf32>
    %46 = arith.mulf %39, %45 : vector<4x32xf32>
    %47 = vector.extract_strided_slice %5 {offsets = [8, 0], sizes = [4, 128], strides = [1, 1]} : vector<32x128xf32> to vector<4x128xf32>
    %48 = arith.truncf %46 : vector<4x32xf32> to vector<4x32xbf16>
    %cst_13 = arith.constant dense<0.000000e+00> : vector<4x128xf32>
    %49 = tpu.matmul %48, %6, %cst_13 {dimension_numbers = #tpu.dot_dimension_numbers<[1], [0], [0], [1], [0, 0, 1, 1], [], []>} : vector<4x32xbf16>, vector<32x128xbf16>, vector<4x128xf32> -> vector<4x128xf32>
    %50 = arith.addf %47, %49 : vector<4x128xf32>
    %51 = arith.negf %50 : vector<4x128xf32>
    %52 = math.exp %51 : vector<4x128xf32>
    %cst_14 = arith.constant 1.000000e+00 : f32
    %53 = vector.broadcast %cst_14 : f32 to vector<4x128xf32>
    %54 = arith.addf %53, %52 : vector<4x128xf32>
    %55 = arith.divf %53, %54 : vector<4x128xf32>
    %56 = vector.extract_strided_slice %55 {offsets = [0, 0], sizes = [4, 32], strides = [1, 1]} : vector<4x128xf32> to vector<4x32xf32>
    %57 = vector.extract_strided_slice %55 {offsets = [0, 32], sizes = [4, 32], strides = [1, 1]} : vector<4x128xf32> to vector<4x32xf32>
    %58 = vector.extract_strided_slice %55 {offsets = [0, 96], sizes = [4, 32], strides = [1, 1]} : vector<4x128xf32> to vector<4x32xf32>
    %59 = vector.extract_strided_slice %50 {offsets = [0, 64], sizes = [4, 32], strides = [1, 1]} : vector<4x128xf32> to vector<4x32xf32>
    %60 = math.tanh %59 : vector<4x32xf32>
    %61 = arith.mulf %57, %44 : vector<4x32xf32>
    %62 = arith.mulf %56, %60 : vector<4x32xf32>
    %63 = arith.addf %61, %62 : vector<4x32xf32>
    %64 = math.tanh %63 : vector<4x32xf32>
    %65 = arith.mulf %58, %64 : vector<4x32xf32>
    %66 = vector.extract_strided_slice %5 {offsets = [12, 0], sizes = [4, 128], strides = [1, 1]} : vector<32x128xf32> to vector<4x128xf32>
    %67 = arith.truncf %65 : vector<4x32xf32> to vector<4x32xbf16>
    %cst_15 = arith.constant dense<0.000000e+00> : vector<4x128xf32>
    %68 = tpu.matmul %67, %6, %cst_15 {dimension_numbers = #tpu.dot_dimension_numbers<[1], [0], [0], [1], [0, 0, 1, 1], [], []>} : vector<4x32xbf16>, vector<32x128xbf16>, vector<4x128xf32> -> vector<4x128xf32>
    %69 = arith.addf %66, %68 : vector<4x128xf32>
    %70 = arith.negf %69 : vector<4x128xf32>
    %71 = math.exp %70 : vector<4x128xf32>
    %cst_16 = arith.constant 1.000000e+00 : f32
    %72 = vector.broadcast %cst_16 : f32 to vector<4x128xf32>
    %73 = arith.addf %72, %71 : vector<4x128xf32>
    %74 = arith.divf %72, %73 : vector<4x128xf32>
    %75 = vector.extract_strided_slice %74 {offsets = [0, 0], sizes = [4, 32], strides = [1, 1]} : vector<4x128xf32> to vector<4x32xf32>
    %76 = vector.extract_strided_slice %74 {offsets = [0, 32], sizes = [4, 32], strides = [1, 1]} : vector<4x128xf32> to vector<4x32xf32>
    %77 = vector.extract_strided_slice %74 {offsets = [0, 96], sizes = [4, 32], strides = [1, 1]} : vector<4x128xf32> to vector<4x32xf32>
    %78 = vector.extract_strided_slice %69 {offsets = [0, 64], sizes = [4, 32], strides = [1, 1]} : vector<4x128xf32> to vector<4x32xf32>
    %79 = math.tanh %78 : vector<4x32xf32>
    %80 = arith.mulf %76, %63 : vector<4x32xf32>
    %81 = arith.mulf %75, %79 : vector<4x32xf32>
    %82 = arith.addf %80, %81 : vector<4x32xf32>
    %83 = math.tanh %82 : vector<4x32xf32>
    %84 = arith.mulf %77, %83 : vector<4x32xf32>
    %85 = vector.extract_strided_slice %5 {offsets = [16, 0], sizes = [4, 128], strides = [1, 1]} : vector<32x128xf32> to vector<4x128xf32>
    %86 = arith.truncf %84 : vector<4x32xf32> to vector<4x32xbf16>
    %cst_17 = arith.constant dense<0.000000e+00> : vector<4x128xf32>
    %87 = tpu.matmul %86, %6, %cst_17 {dimension_numbers = #tpu.dot_dimension_numbers<[1], [0], [0], [1], [0, 0, 1, 1], [], []>} : vector<4x32xbf16>, vector<32x128xbf16>, vector<4x128xf32> -> vector<4x128xf32>
    %88 = arith.addf %85, %87 : vector<4x128xf32>
    %89 = arith.negf %88 : vector<4x128xf32>
    %90 = math.exp %89 : vector<4x128xf32>
    %cst_18 = arith.constant 1.000000e+00 : f32
    %91 = vector.broadcast %cst_18 : f32 to vector<4x128xf32>
    %92 = arith.addf %91, %90 : vector<4x128xf32>
    %93 = arith.divf %91, %92 : vector<4x128xf32>
    %94 = vector.extract_strided_slice %93 {offsets = [0, 0], sizes = [4, 32], strides = [1, 1]} : vector<4x128xf32> to vector<4x32xf32>
    %95 = vector.extract_strided_slice %93 {offsets = [0, 32], sizes = [4, 32], strides = [1, 1]} : vector<4x128xf32> to vector<4x32xf32>
    %96 = vector.extract_strided_slice %93 {offsets = [0, 96], sizes = [4, 32], strides = [1, 1]} : vector<4x128xf32> to vector<4x32xf32>
    %97 = vector.extract_strided_slice %88 {offsets = [0, 64], sizes = [4, 32], strides = [1, 1]} : vector<4x128xf32> to vector<4x32xf32>
    %98 = math.tanh %97 : vector<4x32xf32>
    %99 = arith.mulf %95, %82 : vector<4x32xf32>
    %100 = arith.mulf %94, %98 : vector<4x32xf32>
    %101 = arith.addf %99, %100 : vector<4x32xf32>
    %102 = math.tanh %101 : vector<4x32xf32>
    %103 = arith.mulf %96, %102 : vector<4x32xf32>
    %104 = vector.extract_strided_slice %5 {offsets = [20, 0], sizes = [4, 128], strides = [1, 1]} : vector<32x128xf32> to vector<4x128xf32>
    %105 = arith.truncf %103 : vector<4x32xf32> to vector<4x32xbf16>
    %cst_19 = arith.constant dense<0.000000e+00> : vector<4x128xf32>
    %106 = tpu.matmul %105, %6, %cst_19 {dimension_numbers = #tpu.dot_dimension_numbers<[1], [0], [0], [1], [0, 0, 1, 1], [], []>} : vector<4x32xbf16>, vector<32x128xbf16>, vector<4x128xf32> -> vector<4x128xf32>
    %107 = arith.addf %104, %106 : vector<4x128xf32>
    %108 = arith.negf %107 : vector<4x128xf32>
    %109 = math.exp %108 : vector<4x128xf32>
    %cst_20 = arith.constant 1.000000e+00 : f32
    %110 = vector.broadcast %cst_20 : f32 to vector<4x128xf32>
    %111 = arith.addf %110, %109 : vector<4x128xf32>
    %112 = arith.divf %110, %111 : vector<4x128xf32>
    %113 = vector.extract_strided_slice %112 {offsets = [0, 0], sizes = [4, 32], strides = [1, 1]} : vector<4x128xf32> to vector<4x32xf32>
    %114 = vector.extract_strided_slice %112 {offsets = [0, 32], sizes = [4, 32], strides = [1, 1]} : vector<4x128xf32> to vector<4x32xf32>
    %115 = vector.extract_strided_slice %112 {offsets = [0, 96], sizes = [4, 32], strides = [1, 1]} : vector<4x128xf32> to vector<4x32xf32>
    %116 = vector.extract_strided_slice %107 {offsets = [0, 64], sizes = [4, 32], strides = [1, 1]} : vector<4x128xf32> to vector<4x32xf32>
    %117 = math.tanh %116 : vector<4x32xf32>
    %118 = arith.mulf %114, %101 : vector<4x32xf32>
    %119 = arith.mulf %113, %117 : vector<4x32xf32>
    %120 = arith.addf %118, %119 : vector<4x32xf32>
    %121 = math.tanh %120 : vector<4x32xf32>
    %122 = arith.mulf %115, %121 : vector<4x32xf32>
    %123 = vector.extract_strided_slice %5 {offsets = [24, 0], sizes = [4, 128], strides = [1, 1]} : vector<32x128xf32> to vector<4x128xf32>
    %124 = arith.truncf %122 : vector<4x32xf32> to vector<4x32xbf16>
    %cst_21 = arith.constant dense<0.000000e+00> : vector<4x128xf32>
    %125 = tpu.matmul %124, %6, %cst_21 {dimension_numbers = #tpu.dot_dimension_numbers<[1], [0], [0], [1], [0, 0, 1, 1], [], []>} : vector<4x32xbf16>, vector<32x128xbf16>, vector<4x128xf32> -> vector<4x128xf32>
    %126 = arith.addf %123, %125 : vector<4x128xf32>
    %127 = arith.negf %126 : vector<4x128xf32>
    %128 = math.exp %127 : vector<4x128xf32>
    %cst_22 = arith.constant 1.000000e+00 : f32
    %129 = vector.broadcast %cst_22 : f32 to vector<4x128xf32>
    %130 = arith.addf %129, %128 : vector<4x128xf32>
    %131 = arith.divf %129, %130 : vector<4x128xf32>
    %132 = vector.extract_strided_slice %131 {offsets = [0, 0], sizes = [4, 32], strides = [1, 1]} : vector<4x128xf32> to vector<4x32xf32>
    %133 = vector.extract_strided_slice %131 {offsets = [0, 32], sizes = [4, 32], strides = [1, 1]} : vector<4x128xf32> to vector<4x32xf32>
    %134 = vector.extract_strided_slice %131 {offsets = [0, 96], sizes = [4, 32], strides = [1, 1]} : vector<4x128xf32> to vector<4x32xf32>
    %135 = vector.extract_strided_slice %126 {offsets = [0, 64], sizes = [4, 32], strides = [1, 1]} : vector<4x128xf32> to vector<4x32xf32>
    %136 = math.tanh %135 : vector<4x32xf32>
    %137 = arith.mulf %133, %120 : vector<4x32xf32>
    %138 = arith.mulf %132, %136 : vector<4x32xf32>
    %139 = arith.addf %137, %138 : vector<4x32xf32>
    %140 = math.tanh %139 : vector<4x32xf32>
    %141 = arith.mulf %134, %140 : vector<4x32xf32>
    %142 = vector.extract_strided_slice %5 {offsets = [28, 0], sizes = [4, 128], strides = [1, 1]} : vector<32x128xf32> to vector<4x128xf32>
    %143 = arith.truncf %141 : vector<4x32xf32> to vector<4x32xbf16>
    %cst_23 = arith.constant dense<0.000000e+00> : vector<4x128xf32>
    %144 = tpu.matmul %143, %6, %cst_23 {dimension_numbers = #tpu.dot_dimension_numbers<[1], [0], [0], [1], [0, 0, 1, 1], [], []>} : vector<4x32xbf16>, vector<32x128xbf16>, vector<4x128xf32> -> vector<4x128xf32>
    %145 = arith.addf %142, %144 : vector<4x128xf32>
    %146 = arith.negf %145 : vector<4x128xf32>
    %147 = math.exp %146 : vector<4x128xf32>
    %cst_24 = arith.constant 1.000000e+00 : f32
    %148 = vector.broadcast %cst_24 : f32 to vector<4x128xf32>
    %149 = arith.addf %148, %147 : vector<4x128xf32>
    %150 = arith.divf %148, %149 : vector<4x128xf32>
    %151 = vector.extract_strided_slice %150 {offsets = [0, 0], sizes = [4, 32], strides = [1, 1]} : vector<4x128xf32> to vector<4x32xf32>
    %152 = vector.extract_strided_slice %150 {offsets = [0, 32], sizes = [4, 32], strides = [1, 1]} : vector<4x128xf32> to vector<4x32xf32>
    %153 = vector.extract_strided_slice %150 {offsets = [0, 96], sizes = [4, 32], strides = [1, 1]} : vector<4x128xf32> to vector<4x32xf32>
    %154 = vector.extract_strided_slice %145 {offsets = [0, 64], sizes = [4, 32], strides = [1, 1]} : vector<4x128xf32> to vector<4x32xf32>
    %155 = math.tanh %154 : vector<4x32xf32>
    %156 = arith.mulf %152, %139 : vector<4x32xf32>
    %157 = arith.mulf %151, %155 : vector<4x32xf32>
    %158 = arith.addf %156, %157 : vector<4x32xf32>
    %159 = math.tanh %158 : vector<4x32xf32>
    %160 = arith.mulf %153, %159 : vector<4x32xf32>
    %161 = arith.truncf %160 : vector<4x32xf32> to vector<4x32xbf16>
    %c0_25 = arith.constant 0 : index
    %c0_26 = arith.constant 0 : index
    %162 = vector.load %arg4[%c0_25, %c0_26] : memref<32x128xbf16, #tpu.memory_space<vmem>>, vector<32x128xbf16>
    %cst_27 = arith.constant dense<0.000000e+00> : vector<4x128xf32>
    %163 = tpu.matmul %161, %162, %cst_27 {dimension_numbers = #tpu.dot_dimension_numbers<[1], [0], [0], [1], [0, 0, 1, 1], [], []>} : vector<4x32xbf16>, vector<32x128xbf16>, vector<4x128xf32> -> vector<4x128xf32>
    %c0_28 = arith.constant 0 : index
    %c0_29 = arith.constant 0 : index
    %164 = vector.load %arg5[%c0_28, %c0_29] : memref<1x128xf32, #tpu.memory_space<vmem>>, vector<1x128xf32>
    %165 = vector.broadcast %164 : vector<1x128xf32> to vector<4x128xf32>
    %166 = arith.addf %163, %165 : vector<4x128xf32>
    %c0_30 = arith.constant 0 : index
    %c0_31 = arith.constant 0 : index
    %167 = vector.load %arg6[%c0_30, %c0_31] : memref<4x128xf32, #tpu.memory_space<vmem>>, vector<4x128xf32>
    tpu.vector_store %arg6[%c0_30, %c0_31], %166 {strides = array<i32>} : memref<4x128xf32, #tpu.memory_space<vmem>>, vector<4x128xf32>,
    return
  }
}

</mosaic_0001>

<llo_original>
// kernel: tpu_custom_call.1
$region0: #{tpu_custom_call.1}
  #allocation0 [shape = 'u32[]', space=smem, size = 0x4, offset = 0x4, fixed_abs, tag = 'smem constant byte address 0x4 - core index']
  #allocation1 [shape = 'u32[144,128]{1,0:T(1,128)}', space=vmem, size = 0x12000, scoped, tag = 'internal scratch']
  %s0 = inlined_call_operand.vmem [shape: bf16[32,16], index: 0, kind: input, shape index: {}]
  %s1 = inlined_call_operand.vmem [shape: bf16[16,128], index: 1, kind: input, shape index: {}]
  %s2 = inlined_call_operand.vmem [shape: bf16[32,128], index: 2, kind: input, shape index: {}]
  %s3 = inlined_call_operand.vmem [shape: f32[1,128], index: 3, kind: input, shape index: {}]
  %s4 = inlined_call_operand.hbm [shape: bf16[32,128], index: 4, kind: input, shape index: {}]
  %s5 = inlined_call_operand.vmem [shape: f32[1,128], index: 5, kind: input, shape index: {}]
  %s6 = inlined_call_operand.hbm [shape: f32[4,128], index: 6, kind: output, shape index: {}]
  %s7 = sld [smem:[#allocation0]]
  $region38: #{tpu_custom_call.1} parent=0
    _
  %s9 = ssub.s32 1, %s7
  %s10 = scalar_select 0, %s9, %s7
  $region1: #{tpu_custom_call.1} parent=0
    #allocation2 [shape = 'u8[8192]{0}', space=vmem, size = 0x2000, scoped, tag = 'input window, operand 4, single buffered']
    #allocation3 [shape = 's32[1]{0}', space=sflag, size = 0x4, scoped, tag = 'scoped memory for tpu_custom_call.1']
    #allocation4 [shape = 's32[1]{0}', space=sflag, size = 0x4, scoped, tag = 'scoped memory for tpu_custom_call.1']
    #allocation5 [shape = 'u8[2048]{0}', space=vmem, size = 0x800, scoped, tag = 'output window, operand 0, single buffered']
    %11 = vsyncpa [#allocation3], 0
    %12 = vsyncpa [#allocation4], 0
    // Predicated region
    $region2: #{tpu_custom_call.1} parent=1 // pred_check
      _
    $region3: #{tpu_custom_call.1} parent=1 // pred_check_branch
      %14 = sbr.rel (0) target = $region5
    $region4: #{tpu_custom_call.1} parent=1 // pred_region
      _
    $region5: #{tpu_custom_call.1} parent=1 // pred_fallthru
      _
    // Predicated region
    $region6: #{tpu_custom_call.1} parent=1 // pred_check
      _
    $region7: #{tpu_custom_call.1} parent=1 // pred_check_branch
      %16 = sbr.rel (0) target = $region9
    $region8: #{tpu_custom_call.1} parent=1 // pred_region
      _
    $region9: #{tpu_custom_call.1} parent=1 // pred_fallthru
      _
    // Predicated region
    $region10: #{tpu_custom_call.1} parent=1 // pred_check
      _
    $region11: #{tpu_custom_call.1} parent=1 // pred_check_branch
      %18 = sbr.rel (0) target = $region13
    $region12: #{tpu_custom_call.1} parent=1 // pred_region
      _
    $region13: #{tpu_custom_call.1} parent=1 // pred_fallthru
      _
    // Predicated region
    $region14: #{tpu_custom_call.1} parent=1 // pred_check
      _
    $region15: #{tpu_custom_call.1} parent=1 // pred_check_branch
      %20 = sbr.rel (0) target = $region17
    $region16: #{tpu_custom_call.1} parent=1 // pred_region
      _
    $region17: #{tpu_custom_call.1} parent=1 // pred_fallthru
      _
    // Predicated region
    $region18: #{tpu_custom_call.1} parent=1 // pred_check
      _
    $region19: #{tpu_custom_call.1} parent=1 // pred_check_branch
      %22 = sbr.rel (0) target = $region21
    $region20: #{tpu_custom_call.1} parent=1 // pred_region
      %s24 = ssub.s32 256, 256
      %25 = vsyncadd [#allocation3], %s24
      %s26 = sshll.u32 [#allocation2], 4
      %s27 = int_to_ptr.vmem [resolvable:$true] %s26
      %32 = dma.hbm_to_vmem [thread:$0]  %s4, 256, %s27, [#allocation3], 64, 64, 4
    $region21: #{tpu_custom_call.1} parent=1 // pred_fallthru
      _
    // Predicated region
    $region22: #{tpu_custom_call.1} parent=1 // pred_check
      _
    $region23: #{tpu_custom_call.1} parent=1 // pred_check_branch
      %34 = sbr.rel (0) target = $region25
    $region24: #{tpu_custom_call.1} parent=1 // pred_region
      _
    $region25: #{tpu_custom_call.1} parent=1 // pred_fallthru
      _
    // Predicated region
    $region26: #{tpu_custom_call.1} parent=1 // pred_check
      _
    $region27: #{tpu_custom_call.1} parent=1 // pred_check_branch
      %36 = sbr.rel (0) target = $region29
    $region28: #{tpu_custom_call.1} parent=1 // pred_region
      %37 = dma.done [#allocation3], 256
    $region29: #{tpu_custom_call.1} parent=1 // pred_fallthru
      _
    %v39 = vld [vmem:[%s0] sm:$0xf]
    %v40 = vld [vmem:[%s0 + $0x4] sm:$0xf]
    %v41 = vld [vmem:[%s0 + $0x8] sm:$0xf]
    %v42 = vld [vmem:[%s0 + $0xc] sm:$0xf]
    %v43 = vld [vmem:[%s1] sm:$0xf]
    %v44 = vld [vmem:[%s1 + $0x4] sm:$0xf]
    %v45 = vld [vmem:[%s3] sm:$0x1]
    %v47 = vlaneseq
    %v48 = vshrl.u32 %v47, 7
    %v49 = vsub.s32 0, %v48
    %v50 = vrot.slane %v45, %v49
    %v56 = vunpack.c.l.b16 %v39
    %v57 = vunpack.c.l.b16 %v40
    %v58 = vunpack.c.l.b16 %v41
    %v59 = vunpack.c.l.b16 %v42
    %v60 = vpack.c.b16 %v57, %v56
    %v61 = vpack.c.b16 %v59, %v58
    %v64 = vunpack.c.l.b16 %v43
    %v65 = vunpack.c.l.b16 %v44
    %v66 = vpack.c.b16 %v65, %v64
    %vm68 = vcmask 130048
    %v70 = vsel %vm68, %v60, 0
    %v73 = vsel %vm68, %v61, 0
    %75 = vmatprep.subr.bf16.mxu0 0
    %76 = vmatpush1.bf16.msra.mxu0 0
    %77 = vmatprep.subr.bf16.mxu0 0
    %78 = vmatpush1.bf16.msra.mxu0 0
    %79 = vmatprep.subr.bf16.mxu0 0
    %80 = vmatpush1.bf16.msra.mxu0 0
    %81 = vmatprep.subr.bf16.mxu0 0
    %82 = vmatpush1.bf16.msra.mxu0 0
    %83 = vmatprep.subr.bf16.mxu0 0
    %84 = vmatpush1.bf16.msra.mxu0 0
    %85 = vmatprep.subr.bf16.mxu0 0
    %86 = vmatpush1.bf16.msra.mxu0 0
    %87 = vmatprep.subr.bf16.mxu0 0
    %88 = vmatpush1.bf16.msra.mxu0 0
    %89 = vmatprep.subr.bf16.mxu0 0
    %90 = vmatpush1.bf16.msra.mxu0 %v66
    %91 = vmatprep.subr.bf16.mxu0 0
    %92 = vmatpush2.bf16.msra.mxu0 0
    %93 = vmatprep.subr.bf16.mxu0 0
    %94 = vmatpush2.bf16.msra.mxu0 0
    %95 = vmatprep.subr.bf16.mxu0 0
    %96 = vmatpush2.bf16.msra.mxu0 0
    %97 = vmatprep.subr.bf16.mxu0 0
    %98 = vmatpush2.bf16.msra.mxu0 0
    %99 = vmatprep.subr.bf16.mxu0 0
    %100 = vmatpush2.bf16.msra.mxu0 0
    %101 = vmatprep.subr.bf16.mxu0 0
    %102 = vmatpush2.bf16.msra.mxu0 0
    %103 = vmatprep.subr.bf16.mxu0 0
    %104 = vmatpush2.bf16.msra.mxu0 0
    %105 = vmatprep.subr.bf16.mxu0 0
    %106 = vmatpush2.bf16.msra.mxu0 0
    %107 = vmatprep.mubr.bf16.mxu0 0
    %108 = vmatmul.mubr.bf16.gmra.mxu0 %v70
    %v109 = vpop.f32.mrf.mxu0
    %v110 = vadd.f32 %v50, %v109
    %v111 = vpop.f32.mrf.mxu0
    %v112 = vpop.f32.mrf.mxu0
    %v113 = vadd.f32 %v50, %v112
    %v114 = vpop.f32.mrf.mxu0
    %115 = vmatprep.mubr.bf16.mxu0 0
    %116 = vmatmul.mubr.bf16.gmra.mxu0 %v73
    %v117 = vpop.f32.mrf.mxu0
    %v118 = vadd.f32 %v50, %v117
    %v119 = vpop.f32.mrf.mxu0
    %v120 = vpop.f32.mrf.mxu0
    %v121 = vadd.f32 %v50, %v120
    %v122 = vpop.f32.mrf.mxu0
    %123 = vdwg.mxu0
    %v124 = vld [vmem:[%s2] sm:$0xf]
    %v125 = vld [vmem:[%s2 + $0x4] sm:$0xf]
    %v126 = vld [vmem:[%s2 + $0x8] sm:$0xf]
    %v127 = vld [vmem:[%s2 + $0xc] sm:$0xf]
    %v132 = vunpack.c.l.b16 %v124
    %v133 = vunpack.c.l.b16 %v125
    %v134 = vunpack.c.l.b16 %v126
    %v135 = vunpack.c.l.b16 %v127
    %v136 = vpack.c.b16 %v133, %v132
    %v137 = vpack.c.b16 %v135, %v134
    %vm140 = vcmask 261120
    %v142 = vsel %vm140, 0, 0
    %144 = vmatprep.subr.bf16.mxu0 0
    %145 = vmatpush1.bf16.msra.mxu0 0
    %146 = vmatprep.subr.bf16.mxu0 0
    %147 = vmatpush1.bf16.msra.mxu0 0
    %148 = vmatprep.subr.bf16.mxu0 0
    %149 = vmatpush1.bf16.msra.mxu0 0
    %150 = vmatprep.subr.bf16.mxu0 0
    %151 = vmatpush1.bf16.msra.mxu0 0
    %152 = vmatprep.subr.bf16.mxu0 0
    %153 = vmatpush1.bf16.msra.mxu0 0
    %154 = vmatprep.subr.bf16.mxu0 0
    %155 = vmatpush1.bf16.msra.mxu0 0
    %156 = vmatprep.subr.bf16.mxu0 0
    %157 = vmatpush1.bf16.msra.mxu0 %v137
    %158 = vmatprep.subr.bf16.mxu0 0
    %159 = vmatpush1.bf16.msra.mxu0 %v136
    %160 = vmatprep.subr.bf16.mxu0 0
    %161 = vmatpush2.bf16.msra.mxu0 0
    %162 = vmatprep.subr.bf16.mxu0 0
    %163 = vmatpush2.bf16.msra.mxu0 0
    %164 = vmatprep.subr.bf16.mxu0 0
    %165 = vmatpush2.bf16.msra.mxu0 0
    %166 = vmatprep.subr.bf16.mxu0 0
    %167 = vmatpush2.bf16.msra.mxu0 0
    %168 = vmatprep.subr.bf16.mxu0 0
    %169 = vmatpush2.bf16.msra.mxu0 0
    %170 = vmatprep.subr.bf16.mxu0 0
    %171 = vmatpush2.bf16.msra.mxu0 0
    %172 = vmatprep.subr.bf16.mxu0 0
    %173 = vmatpush2.bf16.msra.mxu0 0
    %174 = vmatprep.subr.bf16.mxu0 0
    %175 = vmatpush2.bf16.msra.mxu0 0
    %176 = vmatprep.mubr.bf16.mxu0 0
    %177 = vmatmul.mubr.bf16.gmra.mxu0 %v142
    %v178 = vpop.f32.mrf.mxu0
    %v179 = vadd.f32 0.0, %v178
    %v180 = vpop.f32.mrf.mxu0
    %v181 = vpop.f32.mrf.mxu0
    %v182 = vpop.f32.mrf.mxu0
    %183 = vdwg.mxu0
    %v184 = vadd.f32 %v110, %v179
    %v185 = vxor.u32 %v184, 2147483648
    %v186 = vmul.f32 %v185, 1.442695
    %v187 = vpow.pop %v186
    %v188 = vadd.f32 %v187, 1.0
    %v189 = vrcp.pop %v188
    %v190 = vmul.f32 1.0, %v189
    %v191 = vtanh.pop %v184
    %v192 = vmul.f32 %v190, 0.0
    %194 = vrot.lane.b32.xlu0 %v191, 64
    %v195 = vpop.permute.xlu0 %194
    %v197 = vmul.f32 %v190, %v195
    %199 = vrot.lane.b32.xlu0 %v197, 32
    %v200 = vpop.permute.xlu0 %199
    %v202 = vadd.f32 %v192, %v200
    %v203 = vtanh.pop %v202
    %205 = vrot.lane.b32.xlu0 %v203, 64
    %v206 = vpop.permute.xlu0 %205
    %v208 = vmul.f32 %v190, %v206
    %v209 = vpack.c.bf16 %v208, %v208
    %211 = vrot.lane.b32.xlu0 %v209, 32
    %v212 = vpop.permute.xlu0 %211
    %v214 = vsel %vm140, %v212, 0
    %216 = vmatprep.subr.bf16.mxu0 0
    %217 = vmatpush1.bf16.msra.mxu0 0
    %218 = vmatprep.subr.bf16.mxu0 0
    %219 = vmatpush1.bf16.msra.mxu0 0
    %220 = vmatprep.subr.bf16.mxu0 0
    %221 = vmatpush1.bf16.msra.mxu0 0
    %222 = vmatprep.subr.bf16.mxu0 0
    %223 = vmatpush1.bf16.msra.mxu0 0
    %224 = vmatprep.subr.bf16.mxu0 0
    %225 = vmatpush1.bf16.msra.mxu0 0
    %226 = vmatprep.subr.bf16.mxu0 0
    %227 = vmatpush1.bf16.msra.mxu0 0
    %228 = vmatprep.subr.bf16.mxu0 0
    %229 = vmatpush1.bf16.msra.mxu0 %v137
    %230 = vmatprep.subr.bf16.mxu0 0
    %231 = vmatpush1.bf16.msra.mxu0 %v136
    %232 = vmatprep.subr.bf16.mxu0 0
    %233 = vmatpush2.bf16.msra.mxu0 0
    %234 = vmatprep.subr.bf16.mxu0 0
    %235 = vmatpush2.bf16.msra.mxu0 0
    %236 = vmatprep.subr.bf16.mxu0 0
    %237 = vmatpush2.bf16.msra.mxu0 0
    %238 = vmatprep.subr.bf16.mxu0 0
    %239 = vmatpush2.bf16.msra.mxu0 0
    %240 = vmatprep.subr.bf16.mxu0 0
    %241 = vmatpush2.bf16.msra.mxu0 0
    %242 = vmatprep.subr.bf16.mxu0 0
    %243 = vmatpush2.bf16.msra.mxu0 0
    %244 = vmatprep.subr.bf16.mxu0 0
    %245 = vmatpush2.bf16.msra.mxu0 0
    %246 = vmatprep.subr.bf16.mxu0 0
    %247 = vmatpush2.bf16.msra.mxu0 0
    %248 = vmatprep.mubr.bf16.mxu0 0
    %249 = vmatmul.mubr.bf16.gmra.mxu0 %v214
    %v250 = vpop.f32.mrf.mxu0
    %v251 = vadd.f32 0.0, %v250
    %v252 = vpop.f32.mrf.mxu0
    %v253 = vpop.f32.mrf.mxu0
    %v254 = vpop.f32.mrf.mxu0
    %255 = vdwg.mxu0
    %v257 = vrot.slane %v251, 4
    %v259 = vadd.f32 %v110, %v257
    %v260 = vxor.u32 %v259, 2147483648
    %v261 = vmul.f32 %v260, 1.442695
    %v262 = vpow.pop %v261
    %v263 = vadd.f32 %v262, 1.0
    %v264 = vrcp.pop %v263
    %v265 = vmul.f32 1.0, %v264
    %v266 = vtanh.pop %v259
    %v268 = vrot.slane %v202, 4
    %v270 = vmul.f32 %v265, %v268
    %272 = vrot.lane.b32.xlu0 %v266, 64
    %v273 = vpop.permute.xlu0 %272
    %v275 = vmul.f32 %v265, %v273
    %277 = vrot.lane.b32.xlu0 %v275, 32
    %v278 = vpop.permute.xlu0 %277
    %v280 = vadd.f32 %v270, %v278
    %v281 = vtanh.pop %v280
    %283 = vrot.lane.b32.xlu0 %v281, 64
    %v284 = vpop.permute.xlu0 %283
    %v286 = vmul.f32 %v265, %v284
    %v287 = vpack.c.bf16 %v286, %v286
    %v289 = vrot.slane %v287, 2
    %290 = vrot.lane.b32.xlu0 %v289, 32
    %v291 = vpop.permute.xlu0 %290
    %v293 = vsel %vm140, %v291, 0
    %295 = vmatprep.subr.bf16.mxu0 0
    %296 = vmatpush1.bf16.msra.mxu0 0
    %297 = vmatprep.subr.bf16.mxu0 0
    %298 = vmatpush1.bf16.msra.mxu0 0
    %299 = vmatprep.subr.bf16.mxu0 0
    %300 = vmatpush1.bf16.msra.mxu0 0
    %301 = vmatprep.subr.bf16.mxu0 0
    %302 = vmatpush1.bf16.msra.mxu0 0
    %303 = vmatprep.subr.bf16.mxu0 0
    %304 = vmatpush1.bf16.msra.mxu0 0
    %305 = vmatprep.subr.bf16.mxu0 0
    %306 = vmatpush1.bf16.msra.mxu0 0
    %307 = vmatprep.subr.bf16.mxu0 0
    %308 = vmatpush1.bf16.msra.mxu0 %v137
    %309 = vmatprep.subr.bf16.mxu0 0
    %310 = vmatpush1.bf16.msra.mxu0 %v136
    %311 = vmatprep.subr.bf16.mxu0 0
    %312 = vmatpush2.bf16.msra.mxu0 0
    %313 = vmatprep.subr.bf16.mxu0 0
    %314 = vmatpush2.bf16.msra.mxu0 0
    %315 = vmatprep.subr.bf16.mxu0 0
    %316 = vmatpush2.bf16.msra.mxu0 0
    %317 = vmatprep.subr.bf16.mxu0 0
    %318 = vmatpush2.bf16.msra.mxu0 0
    %319 = vmatprep.subr.bf16.mxu0 0
    %320 = vmatpush2.bf16.msra.mxu0 0
    %321 = vmatprep.subr.bf16.mxu0 0
    %322 = vmatpush2.bf16.msra.mxu0 0
    %323 = vmatprep.subr.bf16.mxu0 0
    %324 = vmatpush2.bf16.msra.mxu0 0
    %325 = vmatprep.subr.bf16.mxu0 0
    %326 = vmatpush2.bf16.msra.mxu0 0
    %327 = vmatprep.mubr.bf16.mxu0 0
    %328 = vmatmul.mubr.bf16.gmra.mxu0 %v293
    %v329 = vpop.f32.mrf.mxu0
    %v330 = vadd.f32 0.0, %v329
    %v331 = vpop.f32.mrf.mxu0
    %v332 = vpop.f32.mrf.mxu0
    %v333 = vpop.f32.mrf.mxu0
    %334 = vdwg.mxu0
    %v335 = vadd.f32 %v113, %v330
    %v336 = vxor.u32 %v335, 2147483648
    %v337 = vmul.f32 %v336, 1.442695
    %v338 = vpow.pop %v337
    %v339 = vadd.f32 %v338, 1.0
    %v340 = vrcp.pop %v339
    %v341 = vmul.f32 1.0, %v340
    %v342 = vtanh.pop %v335
    %v344 = vrot.slane %v280, 4
    %v346 = vmul.f32 %v341, %v344
    %348 = vrot.lane.b32.xlu0 %v342, 64
    %v349 = vpop.permute.xlu0 %348
    %v351 = vmul.f32 %v341, %v349
    %353 = vrot.lane.b32.xlu0 %v351, 32
    %v354 = vpop.permute.xlu0 %353
    %v356 = vadd.f32 %v346, %v354
    %v357 = vtanh.pop %v356
    %359 = vrot.lane.b32.xlu0 %v357, 64
    %v360 = vpop.permute.xlu0 %359
    %v362 = vmul.f32 %v341, %v360
    %v363 = vpack.c.bf16 %v362, %v362
    %365 = vrot.lane.b32.xlu0 %v363, 32
    %v366 = vpop.permute.xlu0 %365
    %v368 = vsel %vm140, %v366, 0
    %370 = vmatprep.subr.bf16.mxu0 0
    %371 = vmatpush1.bf16.msra.mxu0 0
    %372 = vmatprep.subr.bf16.mxu0 0
    %373 = vmatpush1.bf16.msra.mxu0 0
    %374 = vmatprep.subr.bf16.mxu0 0
    %375 = vmatpush1.bf16.msra.mxu0 0
    %376 = vmatprep.subr.bf16.mxu0 0
    %377 = vmatpush1.bf16.msra.mxu0 0
    %378 = vmatprep.subr.bf16.mxu0 0
    %379 = vmatpush1.bf16.msra.mxu0 0
    %380 = vmatprep.subr.bf16.mxu0 0
    %381 = vmatpush1.bf16.msra.mxu0 0
    %382 = vmatprep.subr.bf16.mxu0 0
    %383 = vmatpush1.bf16.msra.mxu0 %v137
    %384 = vmatprep.subr.bf16.mxu0 0
    %385 = vmatpush1.bf16.msra.mxu0 %v136
    %386 = vmatprep.subr.bf16.mxu0 0
    %387 = vmatpush2.bf16.msra.mxu0 0
    %388 = vmatprep.subr.bf16.mxu0 0
    %389 = vmatpush2.bf16.msra.mxu0 0
    %390 = vmatprep.subr.bf16.mxu0 0
    %391 = vmatpush2.bf16.msra.mxu0 0
    %392 = vmatprep.subr.bf16.mxu0 0
    %393 = vmatpush2.bf16.msra.mxu0 0
    %394 = vmatprep.subr.bf16.mxu0 0
    %395 = vmatpush2.bf16.msra.mxu0 0
    %396 = vmatprep.subr.bf16.mxu0 0
    %397 = vmatpush2.bf16.msra.mxu0 0
    %398 = vmatprep.subr.bf16.mxu0 0
    %399 = vmatpush2.bf16.msra.mxu0 0
    %400 = vmatprep.subr.bf16.mxu0 0
    %401 = vmatpush2.bf16.msra.mxu0 0
    %402 = vmatprep.mubr.bf16.mxu0 0
    %403 = vmatmul.mubr.bf16.gmra.mxu0 %v368
    %v404 = vpop.f32.mrf.mxu0
    %v405 = vadd.f32 0.0, %v404
    %v406 = vpop.f32.mrf.mxu0
    %v407 = vpop.f32.mrf.mxu0
    %v408 = vpop.f32.mrf.mxu0
    %409 = vdwg.mxu0
    %v411 = vrot.slane %v405, 4
    %v413 = vadd.f32 %v113, %v411
    %v414 = vxor.u32 %v413, 2147483648
    %v415 = vmul.f32 %v414, 1.442695
    %v416 = vpow.pop %v415
    %v417 = vadd.f32 %v416, 1.0
    %v418 = vrcp.pop %v417
    %v419 = vmul.f32 1.0, %v418
    %v420 = vtanh.pop %v413
    %v422 = vrot.slane %v356, 4
    %v424 = vmul.f32 %v419, %v422
    %426 = vrot.lane.b32.xlu0 %v420, 64
    %v427 = vpop.permute.xlu0 %426
    %v429 = vmul.f32 %v419, %v427
    %431 = vrot.lane.b32.xlu0 %v429, 32
    %v432 = vpop.permute.xlu0 %431
    %v434 = vadd.f32 %v424, %v432
    %v435 = vtanh.pop %v434
    %437 = vrot.lane.b32.xlu0 %v435, 64
    %v438 = vpop.permute.xlu0 %437
    %v440 = vmul.f32 %v419, %v438
    %v441 = vpack.c.bf16 %v440, %v440
    %v443 = vrot.slane %v441, 2
    %444 = vrot.lane.b32.xlu0 %v443, 32
    %v445 = vpop.permute.xlu0 %444
    %v447 = vsel %vm140, %v445, 0
    %449 = vmatprep.subr.bf16.mxu0 0
    %450 = vmatpush1.bf16.msra.mxu0 0
    %451 = vmatprep.subr.bf16.mxu0 0
    %452 = vmatpush1.bf16.msra.mxu0 0
    %453 = vmatprep.subr.bf16.mxu0 0
    %454 = vmatpush1.bf16.msra.mxu0 0
    %455 = vmatprep.subr.bf16.mxu0 0
    %456 = vmatpush1.bf16.msra.mxu0 0
    %457 = vmatprep.subr.bf16.mxu0 0
    %458 = vmatpush1.bf16.msra.mxu0 0
    %459 = vmatprep.subr.bf16.mxu0 0
    %460 = vmatpush1.bf16.msra.mxu0 0
    %461 = vmatprep.subr.bf16.mxu0 0
    %462 = vmatpush1.bf16.msra.mxu0 %v137
    %463 = vmatprep.subr.bf16.mxu0 0
    %464 = vmatpush1.bf16.msra.mxu0 %v136
    %465 = vmatprep.subr.bf16.mxu0 0
    %466 = vmatpush2.bf16.msra.mxu0 0
    %467 = vmatprep.subr.bf16.mxu0 0
    %468 = vmatpush2.bf16.msra.mxu0 0
    %469 = vmatprep.subr.bf16.mxu0 0
    %470 = vmatpush2.bf16.msra.mxu0 0
    %471 = vmatprep.subr.bf16.mxu0 0
    %472 = vmatpush2.bf16.msra.mxu0 0
    %473 = vmatprep.subr.bf16.mxu0 0
    %474 = vmatpush2.bf16.msra.mxu0 0
    %475 = vmatprep.subr.bf16.mxu0 0
    %476 = vmatpush2.bf16.msra.mxu0 0
    %477 = vmatprep.subr.bf16.mxu0 0
    %478 = vmatpush2.bf16.msra.mxu0 0
    %479 = vmatprep.subr.bf16.mxu0 0
    %480 = vmatpush2.bf16.msra.mxu0 0
    %481 = vmatprep.mubr.bf16.mxu0 0
    %482 = vmatmul.mubr.bf16.gmra.mxu0 %v447
    %v483 = vpop.f32.mrf.mxu0
    %v484 = vadd.f32 0.0, %v483
    %v485 = vpop.f32.mrf.mxu0
    %v486 = vpop.f32.mrf.mxu0
    %v487 = vpop.f32.mrf.mxu0
    %488 = vdwg.mxu0
    %v489 = vadd.f32 %v118, %v484
    %v490 = vxor.u32 %v489, 2147483648
    %v491 = vmul.f32 %v490, 1.442695
    %v492 = vpow.pop %v491
    %v493 = vadd.f32 %v492, 1.0
    %v494 = vrcp.pop %v493
    %v495 = vmul.f32 1.0, %v494
    %v496 = vtanh.pop %v489
    %v498 = vrot.slane %v434, 4
    %v500 = vmul.f32 %v495, %v498
    %502 = vrot.lane.b32.xlu0 %v496, 64
    %v503 = vpop.permute.xlu0 %502
    %v505 = vmul.f32 %v495, %v503
    %507 = vrot.lane.b32.xlu0 %v505, 32
    %v508 = vpop.permute.xlu0 %507
    %v510 = vadd.f32 %v500, %v508
    %v511 = vtanh.pop %v510
    %513 = vrot.lane.b32.xlu0 %v511, 64
    %v514 = vpop.permute.xlu0 %513
    %v516 = vmul.f32 %v495, %v514
    %v517 = vpack.c.bf16 %v516, %v516
    %519 = vrot.lane.b32.xlu0 %v517, 32
    %v520 = vpop.permute.xlu0 %519
    %v522 = vsel %vm140, %v520, 0
    %524 = vmatprep.subr.bf16.mxu0 0
    %525 = vmatpush1.bf16.msra.mxu0 0
    %526 = vmatprep.subr.bf16.mxu0 0
    %527 = vmatpush1.bf16.msra.mxu0 0
    %528 = vmatprep.subr.bf16.mxu0 0
    %529 = vmatpush1.bf16.msra.mxu0 0
    %530 = vmatprep.subr.bf16.mxu0 0
    %531 = vmatpush1.bf16.msra.mxu0 0
    %532 = vmatprep.subr.bf16.mxu0 0
    %533 = vmatpush1.bf16.msra.mxu0 0
    %534 = vmatprep.subr.bf16.mxu0 0
    %535 = vmatpush1.bf16.msra.mxu0 0
    %536 = vmatprep.subr.bf16.mxu0 0
    %537 = vmatpush1.bf16.msra.mxu0 %v137
    %538 = vmatprep.subr.bf16.mxu0 0
    %539 = vmatpush1.bf16.msra.mxu0 %v136
    %540 = vmatprep.subr.bf16.mxu0 0
    %541 = vmatpush2.bf16.msra.mxu0 0
    %542 = vmatprep.subr.bf16.mxu0 0
    %543 = vmatpush2.bf16.msra.mxu0 0
    %544 = vmatprep.subr.bf16.mxu0 0
    %545 = vmatpush2.bf16.msra.mxu0 0
    %546 = vmatprep.subr.bf16.mxu0 0
    %547 = vmatpush2.bf16.msra.mxu0 0
    %548 = vmatprep.subr.bf16.mxu0 0
    %549 = vmatpush2.bf16.msra.mxu0 0
    %550 = vmatprep.subr.bf16.mxu0 0
    %551 = vmatpush2.bf16.msra.mxu0 0
    %552 = vmatprep.subr.bf16.mxu0 0
    %553 = vmatpush2.bf16.msra.mxu0 0
    %554 = vmatprep.subr.bf16.mxu0 0
    %555 = vmatpush2.bf16.msra.mxu0 0
    %556 = vmatprep.mubr.bf16.mxu0 0
    %557 = vmatmul.mubr.bf16.gmra.mxu0 %v522
    %v558 = vpop.f32.mrf.mxu0
    %v559 = vadd.f32 0.0, %v558
    %v560 = vpop.f32.mrf.mxu0
    %v561 = vpop.f32.mrf.mxu0
    %v562 = vpop.f32.mrf.mxu0
    %563 = vdwg.mxu0
    %v565 = vrot.slane %v559, 4
    %v567 = vadd.f32 %v118, %v565
    %v568 = vxor.u32 %v567, 2147483648
    %v569 = vmul.f32 %v568, 1.442695
    %v570 = vpow.pop %v569
    %v571 = vadd.f32 %v570, 1.0
    %v572 = vrcp.pop %v571
    %v573 = vmul.f32 1.0, %v572
    %v574 = vtanh.pop %v567
    %v576 = vrot.slane %v510, 4
    %v578 = vmul.f32 %v573, %v576
    %580 = vrot.lane.b32.xlu0 %v574, 64
    %v581 = vpop.permute.xlu0 %580
    %v583 = vmul.f32 %v573, %v581
    %585 = vrot.lane.b32.xlu0 %v583, 32
    %v586 = vpop.permute.xlu0 %585
    %v588 = vadd.f32 %v578, %v586
    %v589 = vtanh.pop %v588
    %591 = vrot.lane.b32.xlu0 %v589, 64
    %v592 = vpop.permute.xlu0 %591
    %v594 = vmul.f32 %v573, %v592
    %v595 = vpack.c.bf16 %v594, %v594
    %v597 = vrot.slane %v595, 2
    %598 = vrot.lane.b32.xlu0 %v597, 32
    %v599 = vpop.permute.xlu0 %598
    %v601 = vsel %vm140, %v599, 0
    %603 = vmatprep.subr.bf16.mxu0 0
    %604 = vmatpush1.bf16.msra.mxu0 0
    %605 = vmatprep.subr.bf16.mxu0 0
    %606 = vmatpush1.bf16.msra.mxu0 0
    %607 = vmatprep.subr.bf16.mxu0 0
    %608 = vmatpush1.bf16.msra.mxu0 0
    %609 = vmatprep.subr.bf16.mxu0 0
    %610 = vmatpush1.bf16.msra.mxu0 0
    %611 = vmatprep.subr.bf16.mxu0 0
    %612 = vmatpush1.bf16.msra.mxu0 0
    %613 = vmatprep.subr.bf16.mxu0 0
    %614 = vmatpush1.bf16.msra.mxu0 0
    %615 = vmatprep.subr.bf16.mxu0 0
    %616 = vmatpush1.bf16.msra.mxu0 %v137
    %617 = vmatprep.subr.bf16.mxu0 0
    %618 = vmatpush1.bf16.msra.mxu0 %v136
    %619 = vmatprep.subr.bf16.mxu0 0
    %620 = vmatpush2.bf16.msra.mxu0 0
    %621 = vmatprep.subr.bf16.mxu0 0
    %622 = vmatpush2.bf16.msra.mxu0 0
    %623 = vmatprep.subr.bf16.mxu0 0
    %624 = vmatpush2.bf16.msra.mxu0 0
    %625 = vmatprep.subr.bf16.mxu0 0
    %626 = vmatpush2.bf16.msra.mxu0 0
    %627 = vmatprep.subr.bf16.mxu0 0
    %628 = vmatpush2.bf16.msra.mxu0 0
    %629 = vmatprep.subr.bf16.mxu0 0
    %630 = vmatpush2.bf16.msra.mxu0 0
    %631 = vmatprep.subr.bf16.mxu0 0
    %632 = vmatpush2.bf16.msra.mxu0 0
    %633 = vmatprep.subr.bf16.mxu0 0
    %634 = vmatpush2.bf16.msra.mxu0 0
    %635 = vmatprep.mubr.bf16.mxu0 0
    %636 = vmatmul.mubr.bf16.gmra.mxu0 %v601
    %v637 = vpop.f32.mrf.mxu0
    %v638 = vadd.f32 0.0, %v637
    %v639 = vpop.f32.mrf.mxu0
    %v640 = vpop.f32.mrf.mxu0
    %v641 = vpop.f32.mrf.mxu0
    %642 = vdwg.mxu0
    %v643 = vadd.f32 %v121, %v638
    %v644 = vxor.u32 %v643, 2147483648
    %v645 = vmul.f32 %v644, 1.442695
    %v646 = vpow.pop %v645
    %v647 = vadd.f32 %v646, 1.0
    %v648 = vrcp.pop %v647
    %v649 = vmul.f32 1.0, %v648
    %v650 = vtanh.pop %v643
    %v652 = vrot.slane %v588, 4
    %v654 = vmul.f32 %v649, %v652
    %656 = vrot.lane.b32.xlu0 %v650, 64
    %v657 = vpop.permute.xlu0 %656
    %v659 = vmul.f32 %v649, %v657
    %661 = vrot.lane.b32.xlu0 %v659, 32
    %v662 = vpop.permute.xlu0 %661
    %v664 = vadd.f32 %v654, %v662
    %v665 = vtanh.pop %v664
    %667 = vrot.lane.b32.xlu0 %v665, 64
    %v668 = vpop.permute.xlu0 %667
    %v670 = vmul.f32 %v649, %v668
    %v671 = vpack.c.bf16 %v670, %v670
    %673 = vrot.lane.b32.xlu0 %v671, 32
    %v674 = vpop.permute.xlu0 %673
    %v676 = vsel %vm140, %v674, 0
    %678 = vmatprep.subr.bf16.mxu0 0
    %679 = vmatpush1.bf16.msra.mxu0 0
    %680 = vmatprep.subr.bf16.mxu0 0
    %681 = vmatpush1.bf16.msra.mxu0 0
    %682 = vmatprep.subr.bf16.mxu0 0
    %683 = vmatpush1.bf16.msra.mxu0 0
    %684 = vmatprep.subr.bf16.mxu0 0
    %685 = vmatpush1.bf16.msra.mxu0 0
    %686 = vmatprep.subr.bf16.mxu0 0
    %687 = vmatpush1.bf16.msra.mxu0 0
    %688 = vmatprep.subr.bf16.mxu0 0
    %689 = vmatpush1.bf16.msra.mxu0 0
    %690 = vmatprep.subr.bf16.mxu0 0
    %691 = vmatpush1.bf16.msra.mxu0 %v137
    %692 = vmatprep.subr.bf16.mxu0 0
    %693 = vmatpush1.bf16.msra.mxu0 %v136
    %694 = vmatprep.subr.bf16.mxu0 0
    %695 = vmatpush2.bf16.msra.mxu0 0
    %696 = vmatprep.subr.bf16.mxu0 0
    %697 = vmatpush2.bf16.msra.mxu0 0
    %698 = vmatprep.subr.bf16.mxu0 0
    %699 = vmatpush2.bf16.msra.mxu0 0
    %700 = vmatprep.subr.bf16.mxu0 0
    %701 = vmatpush2.bf16.msra.mxu0 0
    %702 = vmatprep.subr.bf16.mxu0 0
    %703 = vmatpush2.bf16.msra.mxu0 0
    %704 = vmatprep.subr.bf16.mxu0 0
    %705 = vmatpush2.bf16.msra.mxu0 0
    %706 = vmatprep.subr.bf16.mxu0 0
    %707 = vmatpush2.bf16.msra.mxu0 0
    %708 = vmatprep.subr.bf16.mxu0 0
    %709 = vmatpush2.bf16.msra.mxu0 0
    %710 = vmatprep.mubr.bf16.mxu0 0
    %711 = vmatmul.mubr.bf16.gmra.mxu0 %v676
    %v712 = vpop.f32.mrf.mxu0
    %v713 = vadd.f32 0.0, %v712
    %v714 = vpop.f32.mrf.mxu0
    %v715 = vpop.f32.mrf.mxu0
    %v716 = vpop.f32.mrf.mxu0
    %717 = vdwg.mxu0
    %v719 = vrot.slane %v713, 4
    %v721 = vadd.f32 %v121, %v719
    %v722 = vxor.u32 %v721, 2147483648
    %v723 = vmul.f32 %v722, 1.442695
    %v724 = vpow.pop %v723
    %v725 = vadd.f32 %v724, 1.0
    %v726 = vrcp.pop %v725
    %v727 = vmul.f32 1.0, %v726
    %v728 = vtanh.pop %v721
    %v730 = vrot.slane %v664, 4
    %v732 = vmul.f32 %v727, %v730
    %734 = vrot.lane.b32.xlu0 %v728, 64
    %v735 = vpop.permute.xlu0 %734
    %v737 = vmul.f32 %v727, %v735
    %739 = vrot.lane.b32.xlu0 %v737, 32
    %v740 = vpop.permute.xlu0 %739
    %v742 = vadd.f32 %v732, %v740
    %v743 = vtanh.pop %v742
    %745 = vrot.lane.b32.xlu0 %v743, 64
    %v746 = vpop.permute.xlu0 %745
    %v748 = vmul.f32 %v727, %v746
    %v749 = vpack.c.bf16 %v748, %v748
    %v750 = vld [vmem:[#allocation2] sm:$0xf]
    %v751 = vld [vmem:[#allocation2 + $0x4] sm:$0xf]
    %v752 = vld [vmem:[#allocation2 + $0x8] sm:$0xf]
    %v753 = vld [vmem:[#allocation2 + $0xc] sm:$0xf]
    %v754 = vld [vmem:[%s5] sm:$0x1]
    %v756 = vlaneseq
    %v757 = vshrl.u32 %v756, 7
    %v758 = vsub.s32 0, %v757
    %v759 = vrot.slane %v754, %v758
    %v762 = vrot.slane %v749, 2
    %763 = vrot.lane.b32.xlu0 %v762, 32
    %v764 = vpop.permute.xlu0 %763
    %v769 = vunpack.c.l.b16 %v750
    %v770 = vunpack.c.l.b16 %v751
    %v771 = vunpack.c.l.b16 %v752
    %v772 = vunpack.c.l.b16 %v753
    %v773 = vpack.c.b16 %v770, %v769
    %v774 = vpack.c.b16 %v772, %v771
    %v778 = vsel %vm140, %v764, 0
    %780 = vmatprep.subr.bf16.mxu0 0
    %781 = vmatpush1.bf16.msra.mxu0 0
    %782 = vmatprep.subr.bf16.mxu0 0
    %783 = vmatpush1.bf16.msra.mxu0 0
    %784 = vmatprep.subr.bf16.mxu0 0
    %785 = vmatpush1.bf16.msra.mxu0 0
    %786 = vmatprep.subr.bf16.mxu0 0
    %787 = vmatpush1.bf16.msra.mxu0 0
    %788 = vmatprep.subr.bf16.mxu0 0
    %789 = vmatpush1.bf16.msra.mxu0 0
    %790 = vmatprep.subr.bf16.mxu0 0
    %791 = vmatpush1.bf16.msra.mxu0 0
    %792 = vmatprep.subr.bf16.mxu0 0
    %793 = vmatpush1.bf16.msra.mxu0 %v774
    %794 = vmatprep.subr.bf16.mxu0 0
    %795 = vmatpush1.bf16.msra.mxu0 %v773
    %796 = vmatprep.subr.bf16.mxu0 0
    %797 = vmatpush2.bf16.msra.mxu0 0
    %798 = vmatprep.subr.bf16.mxu0 0
    %799 = vmatpush2.bf16.msra.mxu0 0
    %800 = vmatprep.subr.bf16.mxu0 0
    %801 = vmatpush2.bf16.msra.mxu0 0
    %802 = vmatprep.subr.bf16.mxu0 0
    %803 = vmatpush2.bf16.msra.mxu0 0
    %804 = vmatprep.subr.bf16.mxu0 0
    %805 = vmatpush2.bf16.msra.mxu0 0
    %806 = vmatprep.subr.bf16.mxu0 0
    %807 = vmatpush2.bf16.msra.mxu0 0
    %808 = vmatprep.subr.bf16.mxu0 0
    %809 = vmatpush2.bf16.msra.mxu0 0
    %810 = vmatprep.subr.bf16.mxu0 0
    %811 = vmatpush2.bf16.msra.mxu0 0
    %812 = vmatprep.mubr.bf16.mxu0 0
    %813 = vmatmul.mubr.bf16.gmra.mxu0 %v778
    %v814 = vpop.f32.mrf.mxu0
    %v815 = vadd.f32 %v759, %v814
    %v816 = vpop.f32.mrf.mxu0
    %v817 = vpop.f32.mrf.mxu0
    %v818 = vpop.f32.mrf.mxu0
    %819 = vdwg.mxu0
    %820 = vst [vmem:[#allocation5] sm:$0xf] %v815
    // Predicated region
    $region30: #{tpu_custom_call.1} parent=1 // pred_check
      _
    $region31: #{tpu_custom_call.1} parent=1 // pred_check_branch
      %822 = sbr.rel (0) target = $region33
    $region32: #{tpu_custom_call.1} parent=1 // pred_region
      %s824 = ssub.s32 64, 64
      %825 = vsyncadd [#allocation4], %s824
      %s827 = sshll.u32 [#allocation5], 4
      %s828 = int_to_ptr.vmem [resolvable:$true] %s827
      %830 = dma.vmem_to_hbm [thread:$0]  %s828, 64, %s6, [#allocation4]
    $region33: #{tpu_custom_call.1} parent=1 // pred_fallthru
      _
    // Predicated region
    $region34: #{tpu_custom_call.1} parent=1 // pred_check
      _
    $region35: #{tpu_custom_call.1} parent=1 // pred_check_branch
      %832 = sbr.rel (0) target = $region37
    $region36: #{tpu_custom_call.1} parent=1 // pred_region
      %833 = dma.done [#allocation4], 64
    $region37: #{tpu_custom_call.1} parent=1 // pred_fallthru
      _
    %834 = vsyncpa [#allocation3], 1
    %835 = vsyncpa [#allocation4], 1

</llo_original>
